<compile_context>
chip_gen: v6e
topology: v6e:2x2x1
jax: 0.10.0
libtpu: 0.0.40
codegen_flags: <defaults>
</compile_context>

<pallas_src>
import math
import jax
import jax.numpy as jnp
from jax import lax
from jax.experimental import pallas as pl
from jax.experimental.pallas import tpu as pltpu


def _round_up(x, m):
    return ((x + m - 1) // m) * m


# ----------------------------------------------------------------------------
# Fused forward kernel (single invocation, everything whole-array in VMEM)
# ----------------------------------------------------------------------------
def make_fused_kernel(topo_num, n_nodes, hid_dim, sem_hid):
    T = len(topo_num)
    N, H, S = n_nodes, hid_dim, sem_hid
    Ksum = sum(topo_num)
    Kpad = _round_up(Ksum, 8)
    # row offsets of the packed weight slab (all multiples of 8)
    R_GCN = 0
    R_LIN1 = Kpad
    R_GAT = Kpad + T * H
    R_SEM = Kpad + T * H + H

    def kernel(feature_ref, sim_ref, fa_ref, adj_ref, w_ref, b_ref, o_ref, z_ref):
        f32 = jnp.float32

        # ---- unpack packed weight / bias slabs (static, 8-aligned slices) ----
        gcn_w_bd = w_ref[R_GCN:R_GCN + Kpad, 0:T * H]     # block-diag [Kpad, T*H]
        lin1_w   = w_ref[R_LIN1:R_LIN1 + T * H, 0:H]      # [T*H, H]
        gat_w    = w_ref[R_GAT:R_GAT + H, 0:H]            # [H, H]
        sem_w1   = w_ref[R_SEM:R_SEM + H, 0:S]            # [H, S]
        gcn_b  = b_ref[0:1, 0:T * H]                      # concat of the T gcn biases
        lin1_b = b_ref[1:2, 0:H]
        gat_al = b_ref[2:3, 0:H]
        gat_ar = b_ref[3:4, 0:H]
        gat_b  = b_ref[4:5, 0:H]
        sem_b1 = b_ref[5:6, 0:S]
        sem_w2 = b_ref[6:7, 0:S]

        # ---- (1) GCN branches fused with linear1 --------------------------
        # ax_cat[:, cols of topo i] = adj_i @ x_i ; adjacency differs per topo
        # so T small (N,N)x(N,Kpad) pushes are unavoidable, but they are merged
        # into one lane tile with selects (no concat / sub-tile loads).
        fa = fa_ref[...]                                          # [N, Kpad]
        col = lax.broadcasted_iota(jnp.int32, (1, Kpad), 1)
        ax_cat = jnp.zeros((N, Kpad), f32)
        off = 0
        for i in range(T):
            axi = jnp.dot(adj_ref[i], fa, preferred_element_type=f32)   # [N, Kpad]
            sel = (col >= off) & (col < off + topo_num[i])
            ax_cat = jnp.where(sel, axi, ax_cat)
            off += topo_num[i]
        # one block-diagonal matmul produces ALL tanh'd gcn outputs at once,
        # then one matmul applies linear1 (was T matmuls + T adds before).
        g_cat = jnp.tanh(jnp.dot(ax_cat, gcn_w_bd,
                                 preferred_element_type=f32) + gcn_b)   # [N, T*H]
        l = jnp.tanh(jnp.dot(g_cat, lin1_w,
                             preferred_element_type=f32) + lin1_b)      # [N, H]

        # ---- (2) dense single-head GAT over `similary` ---------------------
        h = jnp.dot(feature_ref[...], gat_w, preferred_element_type=f32)  # [N, H]
        er = jnp.sum(h * gat_ar, axis=-1, keepdims=True)                  # [N, 1]
        # source term directly in row form: [1,H] x [N,H] contracting H -> [1,N]
        el_row = lax.dot_general(gat_al, h, (((1,), (1,)), ((), ())),
                                 preferred_element_type=f32)              # [1, N]
        e = er + el_row                                                   # e[i,j]=er[i]+el[j]
        e = jnp.where(e > 0, e, 0.2 * e)                                  # LeakyReLU(0.2)
        e = jnp.where(sim_ref[...] > 0.0, e, -1e9)                        # mask non-edges
        m = jnp.max(e, axis=1, keepdims=True)
        p = jnp.exp(e - m)
        alpha = p * pl.reciprocal(jnp.sum(p, axis=1, keepdims=True), approx=True)
        f = jnp.tanh(jnp.dot(alpha, h, preferred_element_type=f32) + gat_b)  # [N, H]

        # ---- (3) semantic attention over the two views ---------------------
        # write both views straight into the [2N,H] VMEM scratch (no concat copy)
        z_ref[0:N, :] = l
        z_ref[N:2 * N, :] = f
        proj = jnp.tanh(jnp.dot(z_ref[...], sem_w1,
                                preferred_element_type=f32) + sem_b1)     # [2N, S]
        s = jnp.sum(proj * sem_w2, axis=-1, keepdims=True)                # [2N, 1]
        wl = jnp.sum(s[0:N, :], axis=0, keepdims=True) * (1.0 / N)        # [1, 1]
        wf = jnp.sum(s[N:2 * N, :], axis=0, keepdims=True) * (1.0 / N)    # [1, 1]
        mx = jnp.maximum(wl, wf)
        ewl = jnp.exp(wl - mx)
        ewf = jnp.exp(wf - mx)
        inv = 1.0 / (ewl + ewf)            # exact reciprocal: 2-element softmax
        o_ref[...] = (ewl * inv) * l + (ewf * inv) * f

    return kernel


# ----------------------------------------------------------------------------
# Host-side packing: 6 operands total (would be packed once for real weights)
# ----------------------------------------------------------------------------
def pack_operands(params, feature, adjM, similary, feature_attr, topo_num, hid_dim,
                  sem_hid):
    T = len(topo_num)
    N = feature.shape[0]
    H = hid_dim
    S = sem_hid
    Ksum = sum(topo_num)
    Kpad = _round_up(Ksum, 8)
    W = max(T * H, H, S, 128)

    # feature_attr concatenated laneward, zero padded to Kpad
    fa_cat = jnp.zeros((N, Kpad), jnp.float32)
    off = 0
    for i in range(T):
        fa_cat = fa_cat.at[:, off:off + topo_num[i]].set(feature_attr[i])
        off += topo_num[i]

    adj_stack = jnp.stack(adjM, axis=0).astype(jnp.float32)        # [T, N, N]

    # packed weight slab; gcn weights block-diagonal in the first Kpad rows
    rows = Kpad + T * H + H + H
    w_pack = jnp.zeros((rows, W), jnp.float32)
    off = 0
    for i in range(T):
        w_pack = w_pack.at[off:off + topo_num[i], i * H:(i + 1) * H].set(
            params["gcn_w"][i])
        off += topo_num[i]
    w_pack = w_pack.at[Kpad:Kpad + T * H, 0:H].set(params["lin1_w"])
    w_pack = w_pack.at[Kpad + T * H:Kpad + T * H + H, 0:H].set(params["gat_w"])
    w_pack = w_pack.at[Kpad + T * H + H:Kpad + T * H + 2 * H, 0:S].set(
        params["sem_w1"])

    # all small vectors in one [8, W] slab
    b_pack = jnp.zeros((8, W), jnp.float32)
    b_pack = b_pack.at[0, 0:T * H].set(
        jnp.concatenate([b.reshape(-1) for b in params["gcn_b"]]))
    b_pack = b_pack.at[1, 0:H].set(params["lin1_b"].reshape(-1))
    b_pack = b_pack.at[2, 0:H].set(params["gat_al"].reshape(-1))
    b_pack = b_pack.at[3, 0:H].set(params["gat_ar"].reshape(-1))
    b_pack = b_pack.at[4, 0:H].set(params["gat_b"].reshape(-1))
    b_pack = b_pack.at[5, 0:S].set(params["sem_b1"].reshape(-1))
    b_pack = b_pack.at[6, 0:S].set(params["sem_w2"].reshape(-1))

    return (feature.astype(jnp.float32), similary.astype(jnp.float32),
            fa_cat, adj_stack, w_pack, b_pack)


# ----------------------------------------------------------------------------
# Wrapper: one pallas_call, no grid, all 6 operands whole-array in VMEM.
# ----------------------------------------------------------------------------
def topo_agg_forward(params, feature, adjM, similary, feature_attr, *, sem_hid=128):
    N, H = feature.shape
    topo_num = [fa.shape[1] for fa in feature_attr]
    ops = pack_operands(params, feature, adjM, similary, feature_attr,
                        topo_num, H, sem_hid)
    kernel = make_fused_kernel(topo_num, N, H, sem_hid)
    return pl.pallas_call(
        kernel,
        out_shape=jax.ShapeDtypeStruct((N, H), jnp.float32),
        in_specs=[pl.BlockSpec(memory_space=pltpu.MemorySpace.VMEM) for _ in ops],
        out_specs=pl.BlockSpec(memory_space=pltpu.MemorySpace.VMEM),
        scratch_shapes=[pltpu.VMEM((2 * N, H), jnp.float32)],
    )(*ops)


# ----------------------------------------------------------------------------
# Pure-JAX reference (same math, no Pallas) for a sanity check
# ----------------------------------------------------------------------------
def _reference(params, feature, adjM, similary, feature_attr):
    feat_topo = [
        jnp.tanh(adjM[i] @ (feature_attr[i] @ params["gcn_w"][i]) + params["gcn_b"][i])
        for i in range(len(feature_attr))
    ]
    l = jnp.tanh(jnp.concatenate(feat_topo, axis=1) @ params["lin1_w"] + params["lin1_b"])
    h = feature @ params["gat_w"]
    er = jnp.sum(h * params["gat_ar"], axis=-1, keepdims=True)
    el = jnp.sum(h * params["gat_al"], axis=-1)
    e = er + el[None, :]
    e = jnp.where(e > 0, e, 0.2 * e)
    e = jnp.where(similary > 0.0, e, -1e9)
    alpha = jax.nn.softmax(e, axis=1)
    f = jnp.tanh(alpha @ h + params["gat_b"])
    z = jnp.stack([l, f], 1)                                            # [N,2,H]
    pz = jnp.tanh(z @ params["sem_w1"] + params["sem_b1"]) @ params["sem_w2"].T
    beta = jax.nn.softmax(pz.mean(0), axis=0)                           # [2,1]
    return (beta[None, :, :] * z).sum(1)


# ----------------------------------------------------------------------------
if __name__ == "__main__":
    key = jax.random.PRNGKey(0)
    N = 16            # number of nodes
    H = 32            # hid_dim
    topo_num = [8, 12]
    SEM_HID = 128     # SemanticAttention default hidden_size

    ks = list(jax.random.split(key, 20))
    k = iter(ks)

    # ---- deterministic parameter init (mimicking the torch init ranges) ----
    stdv = 1.0 / math.sqrt(H)
    params = {
        "gcn_w": [jax.random.uniform(next(k), (topo_num[i], H), jnp.float32, -stdv, stdv)
                  for i in range(len(topo_num))],
        "gcn_b": [jax.random.uniform(next(k), (1, H), jnp.float32, -stdv, stdv)
                  for _ in range(len(topo_num))],
        "lin1_w": jax.random.uniform(next(k), (len(topo_num) * H, H), jnp.float32,
                                     -1.0 / math.sqrt(len(topo_num) * H),
                                     1.0 / math.sqrt(len(topo_num) * H)),
        "lin1_b": jax.random.uniform(next(k), (1, H), jnp.float32,
                                     -1.0 / math.sqrt(len(topo_num) * H),
                                     1.0 / math.sqrt(len(topo_num) * H)),
        "gat_w": jax.random.normal(next(k), (H, H), jnp.float32) * 0.1,
        # attention vectors / w2 stored in row form ([1,H] / [1,SEM_HID]).
        "gat_al": jax.random.normal(next(k), (1, H), jnp.float32) * 0.1,
        "gat_ar": jax.random.normal(next(k), (1, H), jnp.float32) * 0.1,
        "gat_b": jnp.zeros((1, H), jnp.float32),
        "sem_w1": jax.random.normal(next(k), (H, SEM_HID), jnp.float32) * 0.1,
        "sem_b1": jnp.zeros((1, SEM_HID), jnp.float32),
        "sem_w2": jax.random.normal(next(k), (1, SEM_HID), jnp.float32) * 0.1,
    }

    # ---- deterministic inputs ----
    feature = jax.random.normal(next(k), (N, H), jnp.float32)
    feature_attr = [jax.random.normal(next(k), (N, topo_num[i]), jnp.float32)
                    for i in range(len(topo_num))]
    adjM = []
    for i in range(len(topo_num)):
        a = (jax.random.uniform(next(k), (N, N)) > 0.5).astype(jnp.float32) + jnp.eye(N)
        adjM.append(a / jnp.sum(a, axis=1, keepdims=True))      # row-normalized
    similary = (jax.random.uniform(next(k), (N, N)) > 0.5).astype(jnp.float32) + jnp.eye(N)
    similary = jnp.minimum(similary, 1.0)

    out = topo_agg_forward(params, feature, adjM, similary, feature_attr,
                           sem_hid=SEM_HID)
    out = jax.block_until_ready(out)

    ref = _reference(params, feature, adjM, similary, feature_attr)
    assert out.shape == (N, H)
    # tolerance accounts for the EUP approximate reciprocal used in the
    # [N,N] GAT softmax normalization (the semantic softmax is now exact).
    assert jnp.allclose(out, ref, atol=5e-3, rtol=5e-3), "mismatch vs reference"

    print("KERNEL_OK")
</pallas_src>

<mosaic_0001>
module attributes {stable_mosaic.version = 11 : i64} {
  func.func @kernel(%arg0: memref<16x32xf32, #tpu.memory_space<vmem>>, %arg1: memref<16x16xf32, #tpu.memory_space<vmem>>, %arg2: memref<16x24xf32, #tpu.memory_space<vmem>>, %arg3: memref<2x16x16xf32, #tpu.memory_space<vmem>>, %arg4: memref<152x128xf32, #tpu.memory_space<vmem>>, %arg5: memref<8x128xf32, #tpu.memory_space<vmem>>, %arg6: memref<16x32xf32, #tpu.memory_space<vmem>>, %arg7: memref<32x32xf32, #tpu.memory_space<vmem>>) attributes {dimension_semantics = [], scalar_prefetch = 0 : i64, scratch_operands = 1 : i64, tpu.core_type = #tpu.core_type<tc>} {
    %c0 = arith.constant 0 : index
    %c0_0 = arith.constant 0 : index
    %0 = vector.load %arg4[%c0, %c0_0] : memref<152x128xf32, #tpu.memory_space<vmem>>, vector<24x64xf32>
    %c24 = arith.constant 24 : index
    %c0_1 = arith.constant 0 : index
    %1 = vector.load %arg4[%c24, %c0_1] : memref<152x128xf32, #tpu.memory_space<vmem>>, vector<64x32xf32>
    %c88 = arith.constant 88 : index
    %c0_2 = arith.constant 0 : index
    %2 = vector.load %arg4[%c88, %c0_2] : memref<152x128xf32, #tpu.memory_space<vmem>>, vector<32x32xf32>
    %c120 = arith.constant 120 : index
    %c0_3 = arith.constant 0 : index
    %3 = vector.load %arg4[%c120, %c0_3] : memref<152x128xf32, #tpu.memory_space<vmem>>, vector<32x128xf32>
    %c0_4 = arith.constant 0 : index
    %c0_5 = arith.constant 0 : index
    %4 = vector.load %arg5[%c0_4, %c0_5] : memref<8x128xf32, #tpu.memory_space<vmem>>, vector<1x64xf32>
    %c1 = arith.constant 1 : index
    %c0_6 = arith.constant 0 : index
    %5 = vector.load %arg5[%c1, %c0_6] : memref<8x128xf32, #tpu.memory_space<vmem>>, vector<1x32xf32>
    %c2 = arith.constant 2 : index
    %c0_7 = arith.constant 0 : index
    %6 = vector.load %arg5[%c2, %c0_7] : memref<8x128xf32, #tpu.memory_space<vmem>>, vector<1x32xf32>
    %c3 = arith.constant 3 : index
    %c0_8 = arith.constant 0 : index
    %7 = vector.load %arg5[%c3, %c0_8] : memref<8x128xf32, #tpu.memory_space<vmem>>, vector<1x32xf32>
    %c4 = arith.constant 4 : index
    %c0_9 = arith.constant 0 : index
    %8 = vector.load %arg5[%c4, %c0_9] : memref<8x128xf32, #tpu.memory_space<vmem>>, vector<1x32xf32>
    %c5 = arith.constant 5 : index
    %c0_10 = arith.constant 0 : index
    %9 = vector.load %arg5[%c5, %c0_10] : memref<8x128xf32, #tpu.memory_space<vmem>>, vector<1x128xf32>
    %c6 = arith.constant 6 : index
    %c0_11 = arith.constant 0 : index
    %10 = vector.load %arg5[%c6, %c0_11] : memref<8x128xf32, #tpu.memory_space<vmem>>, vector<1x128xf32>
    %c0_12 = arith.constant 0 : index
    %c0_13 = arith.constant 0 : index
    %11 = vector.load %arg2[%c0_12, %c0_13] : memref<16x24xf32, #tpu.memory_space<vmem>>, vector<16x24xf32>
    %12 = tpu.iota {dimensions = array<i32: 1>} : vector<1x24xi32>
    %cst = arith.constant 0.000000e+00 : f32
    %13 = vector.broadcast %cst : f32 to vector<16x24xf32>
    %c0_14 = arith.constant 0 : index
    %c0_15 = arith.constant 0 : index
    %c0_16 = arith.constant 0 : index
    %14 = vector.load %arg3[%c0_14, %c0_15, %c0_16] : memref<2x16x16xf32, #tpu.memory_space<vmem>>, vector<1x16x16xf32>
    %15 = vector.shape_cast %14 : vector<1x16x16xf32> to vector<16x16xf32>
    %cst_17 = arith.constant dense<0.000000e+00> : vector<16x24xf32>
    %16 = tpu.matmul %15, %11, %cst_17 {dimension_numbers = #tpu.dot_dimension_numbers<[1], [0], [0], [1], [0, 0, 1, 1], [], []>} : vector<16x16xf32>, vector<16x24xf32>, vector<16x24xf32> -> vector<16x24xf32>
    %c0_i32 = arith.constant 0 : i32
    %17 = vector.broadcast %c0_i32 : i32 to vector<1x24xi32>
    %18 = arith.cmpi sge, %12, %17 : vector<1x24xi32>
    %c8_i32 = arith.constant 8 : i32
    %19 = vector.broadcast %c8_i32 : i32 to vector<1x24xi32>
    %20 = arith.cmpi slt, %12, %19 : vector<1x24xi32>
    %21 = arith.andi %18, %20 : vector<1x24xi1>
    %22 = vector.shape_cast %21 : vector<1x24xi1> to vector<1x24xi1>
    %23 = vector.broadcast %22 : vector<1x24xi1> to vector<16x24xi1>
    %24 = arith.select %23, %16, %13 : vector<16x24xi1>, vector<16x24xf32>
    %c1_18 = arith.constant 1 : index
    %c0_19 = arith.constant 0 : index
    %c0_20 = arith.constant 0 : index
    %25 = vector.load %arg3[%c1_18, %c0_19, %c0_20] : memref<2x16x16xf32, #tpu.memory_space<vmem>>, vector<1x16x16xf32>
    %26 = vector.shape_cast %25 : vector<1x16x16xf32> to vector<16x16xf32>
    %cst_21 = arith.constant dense<0.000000e+00> : vector<16x24xf32>
    %27 = tpu.matmul %26, %11, %cst_21 {dimension_numbers = #tpu.dot_dimension_numbers<[1], [0], [0], [1], [0, 0, 1, 1], [], []>} : vector<16x16xf32>, vector<16x24xf32>, vector<16x24xf32> -> vector<16x24xf32>
    %c8_i32_22 = arith.constant 8 : i32
    %28 = vector.broadcast %c8_i32_22 : i32 to vector<1x24xi32>
    %29 = arith.cmpi sge, %12, %28 : vector<1x24xi32>
    %c20_i32 = arith.constant 20 : i32
    %30 = vector.broadcast %c20_i32 : i32 to vector<1x24xi32>
    %31 = arith.cmpi slt, %12, %30 : vector<1x24xi32>
    %32 = arith.andi %29, %31 : vector<1x24xi1>
    %33 = vector.shape_cast %32 : vector<1x24xi1> to vector<1x24xi1>
    %34 = vector.broadcast %33 : vector<1x24xi1> to vector<16x24xi1>
    %35 = arith.select %34, %27, %24 : vector<16x24xi1>, vector<16x24xf32>
    %cst_23 = arith.constant dense<0.000000e+00> : vector<16x64xf32>
    %36 = tpu.matmul %35, %0, %cst_23 {dimension_numbers = #tpu.dot_dimension_numbers<[1], [0], [0], [1], [0, 0, 1, 1], [], []>} : vector<16x24xf32>, vector<24x64xf32>, vector<16x64xf32> -> vector<16x64xf32>
    %37 = vector.broadcast %4 : vector<1x64xf32> to vector<16x64xf32>
    %38 = arith.addf %36, %37 : vector<16x64xf32>
    %39 = math.tanh %38 : vector<16x64xf32>
    %cst_24 = arith.constant dense<0.000000e+00> : vector<16x32xf32>
    %40 = tpu.matmul %39, %1, %cst_24 {dimension_numbers = #tpu.dot_dimension_numbers<[1], [0], [0], [1], [0, 0, 1, 1], [], []>} : vector<16x64xf32>, vector<64x32xf32>, vector<16x32xf32> -> vector<16x32xf32>
    %41 = vector.broadcast %5 : vector<1x32xf32> to vector<16x32xf32>
    %42 = arith.addf %40, %41 : vector<16x32xf32>
    %43 = math.tanh %42 : vector<16x32xf32>
    %c0_25 = arith.constant 0 : index
    %c0_26 = arith.constant 0 : index
    %44 = vector.load %arg0[%c0_25, %c0_26] : memref<16x32xf32, #tpu.memory_space<vmem>>, vector<16x32xf32>
    %cst_27 = arith.constant dense<0.000000e+00> : vector<16x32xf32>
    %45 = tpu.matmul %44, %2, %cst_27 {dimension_numbers = #tpu.dot_dimension_numbers<[1], [0], [0], [1], [0, 0, 1, 1], [], []>} : vector<16x32xf32>, vector<32x32xf32>, vector<16x32xf32> -> vector<16x32xf32>
    %46 = vector.broadcast %7 : vector<1x32xf32> to vector<16x32xf32>
    %47 = arith.mulf %45, %46 : vector<16x32xf32>
    %cst_28 = arith.constant dense<0.000000e+00> : vector<16xf32>
    %48 = vector.multi_reduction <add>, %47, %cst_28 [1] : vector<16x32xf32> to vector<16xf32>
    %49 = vector.shape_cast %48 : vector<16xf32> to vector<16x1xf32>
    %cst_29 = arith.constant dense<0.000000e+00> : vector<1x16xf32>
    %50 = tpu.matmul %6, %45, %cst_29 {dimension_numbers = #tpu.dot_dimension_numbers<[1], [1], [0], [0], [0, 0, 1, 0], [], []>} : vector<1x32xf32>, vector<16x32xf32>, vector<1x16xf32> -> vector<1x16xf32>
    %51 = vector.broadcast %49 : vector<16x1xf32> to vector<16x16xf32>
    %52 = vector.broadcast %50 : vector<1x16xf32> to vector<16x16xf32>
    %53 = arith.addf %51, %52 : vector<16x16xf32>
    %cst_30 = arith.constant 0.000000e+00 : f32
    %54 = vector.broadcast %cst_30 : f32 to vector<16x16xf32>
    %55 = arith.cmpf ogt, %53, %54 : vector<16x16xf32>
    %cst_31 = arith.constant 2.000000e-01 : f32
    %56 = vector.broadcast %cst_31 : f32 to vector<16x16xf32>
    %57 = arith.mulf %56, %53 : vector<16x16xf32>
    %58 = arith.select %55, %53, %57 : vector<16x16xi1>, vector<16x16xf32>
    %c0_32 = arith.constant 0 : index
    %c0_33 = arith.constant 0 : index
    %59 = vector.load %arg1[%c0_32, %c0_33] : memref<16x16xf32, #tpu.memory_space<vmem>>, vector<16x16xf32>
    %cst_34 = arith.constant 0.000000e+00 : f32
    %60 = vector.broadcast %cst_34 : f32 to vector<16x16xf32>
    %61 = arith.cmpf ogt, %59, %60 : vector<16x16xf32>
    %cst_35 = arith.constant -1.000000e+09 : f32
    %62 = vector.broadcast %cst_35 : f32 to vector<16x16xf32>
    %63 = arith.select %61, %58, %62 : vector<16x16xi1>, vector<16x16xf32>
    %cst_36 = arith.constant dense<0xFF800000> : vector<16xf32>
    %64 = vector.multi_reduction <maximumf>, %63, %cst_36 [1] : vector<16x16xf32> to vector<16xf32>
    %65 = vector.shape_cast %64 : vector<16xf32> to vector<16x1xf32>
    %66 = vector.broadcast %65 : vector<16x1xf32> to vector<16x16xf32>
    %67 = arith.subf %63, %66 : vector<16x16xf32>
    %68 = math.exp %67 : vector<16x16xf32>
    %cst_37 = arith.constant dense<0.000000e+00> : vector<16xf32>
    %69 = vector.multi_reduction <add>, %68, %cst_37 [1] : vector<16x16xf32> to vector<16xf32>
    %70 = vector.shape_cast %69 : vector<16xf32> to vector<16x1xf32>
    %71 = tpu.reciprocal %70 {approx = true} : vector<16x1xf32> -> vector<16x1xf32>
    %72 = vector.broadcast %71 : vector<16x1xf32> to vector<16x16xf32>
    %73 = arith.mulf %68, %72 : vector<16x16xf32>
    %cst_38 = arith.constant dense<0.000000e+00> : vector<16x32xf32>
    %74 = tpu.matmul %73, %45, %cst_38 {dimension_numbers = #tpu.dot_dimension_numbers<[1], [0], [0], [1], [0, 0, 1, 1], [], []>} : vector<16x16xf32>, vector<16x32xf32>, vector<16x32xf32> -> vector<16x32xf32>
    %75 = vector.broadcast %8 : vector<1x32xf32> to vector<16x32xf32>
    %76 = arith.addf %74, %75 : vector<16x32xf32>
    %77 = math.tanh %76 : vector<16x32xf32>
    %c0_39 = arith.constant 0 : index
    %c0_40 = arith.constant 0 : index
    %78 = vector.load %arg7[%c0_39, %c0_40] : memref<32x32xf32, #tpu.memory_space<vmem>>, vector<16x32xf32>
    tpu.vector_store %arg7[%c0_39, %c0_40], %43 {strides = array<i32>} : memref<32x32xf32, #tpu.memory_space<vmem>>, vector<16x32xf32>,
    %c16 = arith.constant 16 : index
    %c0_41 = arith.constant 0 : index
    %79 = vector.load %arg7[%c16, %c0_41] : memref<32x32xf32, #tpu.memory_space<vmem>>, vector<16x32xf32>
    tpu.vector_store %arg7[%c16, %c0_41], %77 {strides = array<i32>} : memref<32x32xf32, #tpu.memory_space<vmem>>, vector<16x32xf32>,
    %c0_42 = arith.constant 0 : index
    %c0_43 = arith.constant 0 : index
    %80 = vector.load %arg7[%c0_42, %c0_43] : memref<32x32xf32, #tpu.memory_space<vmem>>, vector<32x32xf32>
    %cst_44 = arith.constant dense<0.000000e+00> : vector<32x128xf32>
    %81 = tpu.matmul %80, %3, %cst_44 {dimension_numbers = #tpu.dot_dimension_numbers<[1], [0], [0], [1], [0, 0, 1, 1], [], []>} : vector<32x32xf32>, vector<32x128xf32>, vector<32x128xf32> -> vector<32x128xf32>
    %82 = vector.broadcast %9 : vector<1x128xf32> to vector<32x128xf32>
    %83 = arith.addf %81, %82 : vector<32x128xf32>
    %84 = math.tanh %83 : vector<32x128xf32>
    %85 = vector.broadcast %10 : vector<1x128xf32> to vector<32x128xf32>
    %86 = arith.mulf %84, %85 : vector<32x128xf32>
    %cst_45 = arith.constant dense<0.000000e+00> : vector<32xf32>
    %87 = vector.multi_reduction <add>, %86, %cst_45 [1] : vector<32x128xf32> to vector<32xf32>
    %88 = vector.shape_cast %87 : vector<32xf32> to vector<32x1xf32>
    %89 = vector.extract_strided_slice %88 {offsets = [0, 0], sizes = [16, 1], strides = [1, 1]} : vector<32x1xf32> to vector<16x1xf32>
    %cst_46 = arith.constant dense<0.000000e+00> : vector<1xf32>
    %90 = vector.multi_reduction <add>, %89, %cst_46 [0] : vector<16x1xf32> to vector<1xf32>
    %91 = vector.shape_cast %90 : vector<1xf32> to vector<1x1xf32>
    %cst_47 = arith.constant 6.250000e-02 : f32
    %92 = vector.broadcast %cst_47 : f32 to vector<1x1xf32>
    %93 = arith.mulf %91, %92 : vector<1x1xf32>
    %94 = vector.extract_strided_slice %88 {offsets = [16, 0], sizes = [16, 1], strides = [1, 1]} : vector<32x1xf32> to vector<16x1xf32>
    %cst_48 = arith.constant dense<0.000000e+00> : vector<1xf32>
    %95 = vector.multi_reduction <add>, %94, %cst_48 [0] : vector<16x1xf32> to vector<1xf32>
    %96 = vector.shape_cast %95 : vector<1xf32> to vector<1x1xf32>
    %cst_49 = arith.constant 6.250000e-02 : f32
    %97 = vector.broadcast %cst_49 : f32 to vector<1x1xf32>
    %98 = arith.mulf %96, %97 : vector<1x1xf32>
    %99 = arith.maximumf %93, %98 : vector<1x1xf32>
    %100 = arith.subf %93, %99 : vector<1x1xf32>
    %101 = math.exp %100 : vector<1x1xf32>
    %102 = arith.subf %98, %99 : vector<1x1xf32>
    %103 = math.exp %102 : vector<1x1xf32>
    %104 = arith.addf %101, %103 : vector<1x1xf32>
    %cst_50 = arith.constant 1.000000e+00 : f32
    %105 = vector.broadcast %cst_50 : f32 to vector<1x1xf32>
    %106 = arith.divf %105, %104 : vector<1x1xf32>
    %107 = arith.mulf %101, %106 : vector<1x1xf32>
    %108 = vector.broadcast %107 : vector<1x1xf32> to vector<16x32xf32>
    %109 = arith.mulf %108, %43 : vector<16x32xf32>
    %110 = arith.mulf %103, %106 : vector<1x1xf32>
    %111 = vector.broadcast %110 : vector<1x1xf32> to vector<16x32xf32>
    %112 = arith.mulf %111, %77 : vector<16x32xf32>
    %113 = arith.addf %109, %112 : vector<16x32xf32>
    %c0_51 = arith.constant 0 : index
    %c0_52 = arith.constant 0 : index
    %114 = vector.load %arg6[%c0_51, %c0_52] : memref<16x32xf32, #tpu.memory_space<vmem>>, vector<16x32xf32>
    tpu.vector_store %arg6[%c0_51, %c0_52], %113 {strides = array<i32>} : memref<16x32xf32, #tpu.memory_space<vmem>>, vector<16x32xf32>,
    return
  }
}

</mosaic_0001>

<llo_original>
// kernel: tpu_custom_call.1
$region0: #{tpu_custom_call.1}
  #allocation0 [shape = 'u32[]', space=smem, size = 0x4, offset = 0x4, fixed_abs, tag = 'smem constant byte address 0x4 - core index']
  #allocation1 [shape = 'u32[144,128]{1,0:T(1,128)}', space=vmem, size = 0x12000, scoped, tag = 'internal scratch']
  #allocation2 [shape = 'f32[32,32]{1,0:T(8,128)}', space=vmem, size = 0x4000, scoped, tag = 'scratch operand']
  %s0 = inlined_call_operand.hbm [shape: f32[16,32], index: 0, kind: input, shape index: {}]
  %s1 = inlined_call_operand.hbm [shape: f32[16,16], index: 1, kind: input, shape index: {}]
  %s2 = inlined_call_operand.hbm [shape: f32[16,24], index: 2, kind: input, shape index: {}]
  %s3 = inlined_call_operand.hbm [shape: f32[2,16,16], index: 3, kind: input, shape index: {}]
  %s4 = inlined_call_operand.hbm [shape: f32[152,128], index: 4, kind: input, shape index: {}]
  %s5 = inlined_call_operand.vmem [shape: f32[8,128], index: 5, kind: input, shape index: {}]
  %s6 = inlined_call_operand.hbm [shape: f32[16,32], index: 6, kind: output, shape index: {}]
  %s7 = sld [smem:[#allocation0]]
  $region54: #{tpu_custom_call.1} parent=0
    _
  %s9 = ssub.s32 1, %s7
  %s10 = scalar_select 0, %s9, %s7
  $region1: #{tpu_custom_call.1} parent=0
    #allocation3 [shape = 'u8[8192]{0}', space=vmem, size = 0x2000, scoped, tag = 'input window, operand 0, single buffered']
    #allocation4 [shape = 's32[1]{0}', space=sflag, size = 0x4, scoped, tag = 'scoped memory for tpu_custom_call.1']
    #allocation5 [shape = 's32[1]{0}', space=sflag, size = 0x4, scoped, tag = 'scoped memory for tpu_custom_call.1']
    #allocation6 [shape = 'u8[8192]{0}', space=vmem, size = 0x2000, scoped, tag = 'input window, operand 1, single buffered']
    #allocation7 [shape = 's32[1]{0}', space=sflag, size = 0x4, scoped, tag = 'scoped memory for tpu_custom_call.1']
    #allocation8 [shape = 'u8[8192]{0}', space=vmem, size = 0x2000, scoped, tag = 'input window, operand 2, single buffered']
    #allocation9 [shape = 'u8[16384]{0}', space=vmem, size = 0x4000, scoped, tag = 'input window, operand 3, single buffered']
    #allocation10 [shape = 's32[1]{0}', space=sflag, size = 0x4, scoped, tag = 'scoped memory for tpu_custom_call.1']
    #allocation11 [shape = 'u8[77824]{0}', space=vmem, size = 0x13000, scoped, tag = 'input window, operand 4, single buffered']
    #allocation12 [shape = 'u8[8192]{0}', space=vmem, size = 0x2000, scoped, tag = 'output window, operand 0, single buffered']
    %11 = vsyncpa [#allocation4], 0
    %12 = vsyncpa [#allocation7], 0
    %13 = vsyncpa [#allocation10], 0
    %14 = vsyncpa [#allocation5], 0
    // Predicated region
    $region2: #{tpu_custom_call.1} parent=1 // pred_check
      _
    $region3: #{tpu_custom_call.1} parent=1 // pred_check_branch
      %16 = sbr.rel (0) target = $region5
    $region4: #{tpu_custom_call.1} parent=1 // pred_region
      %s18 = ssub.s32 256, 256
      %19 = vsyncadd [#allocation4], %s18
      %s20 = sshll.u32 [#allocation3], 4
      %s21 = int_to_ptr.vmem [resolvable:$true] %s20
      %26 = dma.hbm_to_vmem [thread:$0]  %s0, 256, %s21, [#allocation4], 128, 128, 8
    $region5: #{tpu_custom_call.1} parent=1 // pred_fallthru
      _
    // Predicated region
    $region6: #{tpu_custom_call.1} parent=1 // pred_check
      _
    $region7: #{tpu_custom_call.1} parent=1 // pred_check_branch
      %28 = sbr.rel (0) target = $region9
    $region8: #{tpu_custom_call.1} parent=1 // pred_region
      %s30 = ssub.s32 256, 256
      %31 = vsyncadd [#allocation7], %s30
      %s32 = sshll.u32 [#allocation6], 4
      %s33 = int_to_ptr.vmem [resolvable:$true] %s32
      %38 = dma.hbm_to_vmem [thread:$0]  %s1, 256, %s33, [#allocation7], 128, 128, 8
    $region9: #{tpu_custom_call.1} parent=1 // pred_fallthru
      _
    // Predicated region
    $region10: #{tpu_custom_call.1} parent=1 // pred_check
      _
    $region11: #{tpu_custom_call.1} parent=1 // pred_check_branch
      %40 = sbr.rel (0) target = $region13
    $region12: #{tpu_custom_call.1} parent=1 // pred_region
      %s42 = ssub.s32 256, 256
      %43 = vsyncadd [#allocation7], %s42
      %s44 = sshll.u32 [#allocation8], 4
      %s45 = int_to_ptr.vmem [resolvable:$true] %s44
      %50 = dma.hbm_to_vmem [thread:$0]  %s2, 256, %s45, [#allocation7], 128, 128, 8
    $region13: #{tpu_custom_call.1} parent=1 // pred_fallthru
      _
    // Predicated region
    $region14: #{tpu_custom_call.1} parent=1 // pred_check
      _
    $region15: #{tpu_custom_call.1} parent=1 // pred_check_branch
      %52 = sbr.rel (0) target = $region17
    $region16: #{tpu_custom_call.1} parent=1 // pred_region
      %s54 = ssub.s32 512, 512
      %55 = vsyncadd [#allocation10], %s54
      %s56 = sshll.u32 [#allocation9], 4
      %s57 = int_to_ptr.vmem [resolvable:$true] %s56
      %62 = dma.hbm_to_vmem [thread:$0]  %s3, 512, %s57, [#allocation10], 128, 128, 8
    $region17: #{tpu_custom_call.1} parent=1 // pred_fallthru
      _
    // Predicated region
    $region18: #{tpu_custom_call.1} parent=1 // pred_check
      _
    $region19: #{tpu_custom_call.1} parent=1 // pred_check_branch
      %64 = sbr.rel (0) target = $region21
    $region20: #{tpu_custom_call.1} parent=1 // pred_region
      %s66 = ssub.s32 2432, 2432
      %67 = vsyncadd [#allocation10], %s66
      %s68 = sshll.u32 [#allocation11], 4
      %s69 = int_to_ptr.vmem [resolvable:$true] %s68
      %74 = dma.hbm_to_vmem [thread:$0]  %s4, 2432, %s69, [#allocation10], 128, 128, 8
    $region21: #{tpu_custom_call.1} parent=1 // pred_fallthru
      _
    // Predicated region
    $region22: #{tpu_custom_call.1} parent=1 // pred_check
      _
    $region23: #{tpu_custom_call.1} parent=1 // pred_check_branch
      %76 = sbr.rel (0) target = $region25
    $region24: #{tpu_custom_call.1} parent=1 // pred_region
      _
    $region25: #{tpu_custom_call.1} parent=1 // pred_fallthru
      _
    // Predicated region
    $region26: #{tpu_custom_call.1} parent=1 // pred_check
      _
    $region27: #{tpu_custom_call.1} parent=1 // pred_check_branch
      %78 = sbr.rel (0) target = $region29
    $region28: #{tpu_custom_call.1} parent=1 // pred_region
      %79 = dma.done [#allocation4], 256
    $region29: #{tpu_custom_call.1} parent=1 // pred_fallthru
      _
    // Predicated region
    $region30: #{tpu_custom_call.1} parent=1 // pred_check
      _
    $region31: #{tpu_custom_call.1} parent=1 // pred_check_branch
      %81 = sbr.rel (0) target = $region33
    $region32: #{tpu_custom_call.1} parent=1 // pred_region
      %82 = dma.done [#allocation7], 256
    $region33: #{tpu_custom_call.1} parent=1 // pred_fallthru
      _
    // Predicated region
    $region34: #{tpu_custom_call.1} parent=1 // pred_check
      _
    $region35: #{tpu_custom_call.1} parent=1 // pred_check_branch
      %84 = sbr.rel (0) target = $region37
    $region36: #{tpu_custom_call.1} parent=1 // pred_region
      %85 = dma.done [#allocation7], 256
    $region37: #{tpu_custom_call.1} parent=1 // pred_fallthru
      _
    // Predicated region
    $region38: #{tpu_custom_call.1} parent=1 // pred_check
      _
    $region39: #{tpu_custom_call.1} parent=1 // pred_check_branch
      %87 = sbr.rel (0) target = $region41
    $region40: #{tpu_custom_call.1} parent=1 // pred_region
      %88 = dma.done [#allocation10], 512
    $region41: #{tpu_custom_call.1} parent=1 // pred_fallthru
      _
    // Predicated region
    $region42: #{tpu_custom_call.1} parent=1 // pred_check
      _
    $region43: #{tpu_custom_call.1} parent=1 // pred_check_branch
      %90 = sbr.rel (0) target = $region45
    $region44: #{tpu_custom_call.1} parent=1 // pred_region
      %91 = dma.done [#allocation10], 2432
    $region45: #{tpu_custom_call.1} parent=1 // pred_fallthru
      _
    %v92 = vld [vmem:[#allocation11] sm:$0xff]
    %v93 = vld [vmem:[#allocation11 + $0x8] sm:$0xff]
    %v94 = vld [vmem:[#allocation11 + $0x10] sm:$0xff]
    %v95 = vld [vmem:[#allocation11 + $0x18] sm:$0xff]
    %v96 = vld [vmem:[#allocation11 + $0x20] sm:$0xff]
    %v97 = vld [vmem:[#allocation11 + $0x28] sm:$0xff]
    %v98 = vld [vmem:[#allocation11 + $0x30] sm:$0xff]
    %v99 = vld [vmem:[#allocation11 + $0x38] sm:$0xff]
    %v100 = vld [vmem:[#allocation11 + $0x40] sm:$0xff]
    %v101 = vld [vmem:[#allocation11 + $0x48] sm:$0xff]
    %v102 = vld [vmem:[#allocation11 + $0x50] sm:$0xff]
    %v103 = vld [vmem:[#allocation11 + $0x58] sm:$0xff]
    %v104 = vld [vmem:[#allocation11 + $0x60] sm:$0xff]
    %v105 = vld [vmem:[#allocation11 + $0x68] sm:$0xff]
    %v106 = vld [vmem:[#allocation11 + $0x70] sm:$0xff]
    %v107 = vld [vmem:[#allocation11 + $0x78] sm:$0xff]
    %v108 = vld [vmem:[#allocation11 + $0x80] sm:$0xff]
    %v109 = vld [vmem:[#allocation11 + $0x88] sm:$0xff]
    %v110 = vld [vmem:[#allocation11 + $0x90] sm:$0xff]
    %v111 = vld [vmem:[%s5] sm:$0x1]
    %v112 = vld [vmem:[%s5 + $0x1] sm:$0x1]
    %v113 = vld [vmem:[%s5 + $0x2] sm:$0x1]
    %v114 = vld [vmem:[%s5 + $0x3] sm:$0x1]
    %v115 = vld [vmem:[%s5 + $0x4] sm:$0x1]
    %v116 = vld [vmem:[%s5 + $0x5] sm:$0x1]
    %v117 = vld [vmem:[%s5 + $0x6] sm:$0x1]
    %v118 = vld [vmem:[#allocation8] sm:$0xff]
    %v119 = vld [vmem:[#allocation8 + $0x8] sm:$0xff]
    %v120 = vlaneseq
    %v121 = vand.u32 %v120, 127
    %v122 = vld [vmem:[#allocation9] sm:$0xff]
    %v123 = vld [vmem:[#allocation9 + $0x8] sm:$0xff]
    %vm124 = vcmask 130048
    %v126 = vsel %vm124, %v122, 0
    %v129 = vsel %vm124, %v123, 0
    %131 = vmatprep.subr.mxu0 0.0
    %132 = vmatpush1.msra.mxu0 0.0
    %133 = vmatprep.subr.mxu0 0.0
    %134 = vmatpush1.msra.mxu0 0.0
    %135 = vmatprep.subr.mxu0 0.0
    %136 = vmatpush1.msra.mxu0 0.0
    %137 = vmatprep.subr.mxu0 0.0
    %138 = vmatpush1.msra.mxu0 0.0
    %139 = vmatprep.subr.mxu0 0.0
    %140 = vmatpush1.msra.mxu0 0.0
    %141 = vmatprep.subr.mxu0 0.0
    %142 = vmatpush1.msra.mxu0 0.0
    %143 = vmatprep.subr.mxu0 0.0
    %144 = vmatpush1.msra.mxu0 0.0
    %145 = vmatprep.subr.mxu0 0.0
    %146 = vmatpush1.msra.mxu0 0.0
    %147 = vmatprep.subr.mxu0 0.0
    %148 = vmatpush1.msra.mxu0 0.0
    %149 = vmatprep.subr.mxu0 0.0
    %150 = vmatpush1.msra.mxu0 0.0
    %151 = vmatprep.subr.mxu0 0.0
    %152 = vmatpush1.msra.mxu0 0.0
    %153 = vmatprep.subr.mxu0 0.0
    %154 = vmatpush1.msra.mxu0 0.0
    %155 = vmatprep.subr.mxu0 0.0
    %156 = vmatpush1.msra.mxu0 0.0
    %157 = vmatprep.subr.mxu0 0.0
    %158 = vmatpush1.msra.mxu0 0.0
    %159 = vmatprep.subr.mxu0 0.0
    %160 = vmatpush1.msra.mxu0 %v119
    %161 = vmatprep.subr.mxu0 0.0
    %162 = vmatpush1.msra.mxu0 %v118
    %163 = vmatprep.subr.mxu0 0.0
    %164 = vmatpush2.msra.mxu0 0.0
    %165 = vmatprep.subr.mxu0 0.0
    %166 = vmatpush2.msra.mxu0 0.0
    %167 = vmatprep.subr.mxu0 0.0
    %168 = vmatpush2.msra.mxu0 0.0
    %169 = vmatprep.subr.mxu0 0.0
    %170 = vmatpush2.msra.mxu0 0.0
    %171 = vmatprep.subr.mxu0 0.0
    %172 = vmatpush2.msra.mxu0 0.0
    %173 = vmatprep.subr.mxu0 0.0
    %174 = vmatpush2.msra.mxu0 0.0
    %175 = vmatprep.subr.mxu0 0.0
    %176 = vmatpush2.msra.mxu0 0.0
    %177 = vmatprep.subr.mxu0 0.0
    %178 = vmatpush2.msra.mxu0 0.0
    %179 = vmatprep.subr.mxu0 0.0
    %180 = vmatpush2.msra.mxu0 0.0
    %181 = vmatprep.subr.mxu0 0.0
    %182 = vmatpush2.msra.mxu0 0.0
    %183 = vmatprep.subr.mxu0 0.0
    %184 = vmatpush2.msra.mxu0 0.0
    %185 = vmatprep.subr.mxu0 0.0
    %186 = vmatpush2.msra.mxu0 0.0
    %187 = vmatprep.subr.mxu0 0.0
    %188 = vmatpush2.msra.mxu0 0.0
    %189 = vmatprep.subr.mxu0 0.0
    %190 = vmatpush2.msra.mxu0 0.0
    %191 = vmatprep.subr.mxu0 0.0
    %192 = vmatpush2.msra.mxu0 0.0
    %193 = vmatprep.subr.mxu0 0.0
    %194 = vmatpush2.msra.mxu0 0.0
    %195 = vmatprep.mubr.f32.mxu0 0.0
    %196 = vmatmul.mubr.f32.gmra.mxu0 %v126
    %v197 = vpop.f32.mrf.mxu0
    %v198 = vadd.f32 0.0, %v197
    %v199 = vpop.f32.mrf.mxu0
    %200 = vmatprep.mubr.f32.mxu0 0.0
    %201 = vmatmul.mubr.f32.gmra.mxu0 %v129
    %v202 = vpop.f32.mrf.mxu0
    %v203 = vadd.f32 0.0, %v202
    %v204 = vpop.f32.mrf.mxu0
    %205 = vdwg.mxu0
    %vm206 = vcmp.ge.s32.totalorder %v121, 0
    %vm207 = vcmp.lt.s32.totalorder %v121, 8
    %vm208 = vmand %vm206, %vm207
    %v209 = vsel %vm208, 1, 0
    %vm210 = vcmp.eq.s32.totalorder %v209, 1
    %v211 = vsel %vm210, %v198, 0.0
    %v212 = vsel %vm210, %v203, 0.0
    %s213 = scalar_lea.vmem [#allocation9], 16
    %v214 = vld [vmem:[%s213] sm:$0xff]
    %v215 = vld [vmem:[%s213 + $0x8] sm:$0xff]
    %v217 = vsel %vm124, %v214, 0
    %v220 = vsel %vm124, %v215, 0
    %222 = vmatprep.subr.mxu0 0.0
    %223 = vmatpush1.msra.mxu0 0.0
    %224 = vmatprep.subr.mxu0 0.0
    %225 = vmatpush1.msra.mxu0 0.0
    %226 = vmatprep.subr.mxu0 0.0
    %227 = vmatpush1.msra.mxu0 0.0
    %228 = vmatprep.subr.mxu0 0.0
    %229 = vmatpush1.msra.mxu0 0.0
    %230 = vmatprep.subr.mxu0 0.0
    %231 = vmatpush1.msra.mxu0 0.0
    %232 = vmatprep.subr.mxu0 0.0
    %233 = vmatpush1.msra.mxu0 0.0
    %234 = vmatprep.subr.mxu0 0.0
    %235 = vmatpush1.msra.mxu0 0.0
    %236 = vmatprep.subr.mxu0 0.0
    %237 = vmatpush1.msra.mxu0 0.0
    %238 = vmatprep.subr.mxu0 0.0
    %239 = vmatpush1.msra.mxu0 0.0
    %240 = vmatprep.subr.mxu0 0.0
    %241 = vmatpush1.msra.mxu0 0.0
    %242 = vmatprep.subr.mxu0 0.0
    %243 = vmatpush1.msra.mxu0 0.0
    %244 = vmatprep.subr.mxu0 0.0
    %245 = vmatpush1.msra.mxu0 0.0
    %246 = vmatprep.subr.mxu0 0.0
    %247 = vmatpush1.msra.mxu0 0.0
    %248 = vmatprep.subr.mxu0 0.0
    %249 = vmatpush1.msra.mxu0 0.0
    %250 = vmatprep.subr.mxu0 0.0
    %251 = vmatpush1.msra.mxu0 %v119
    %252 = vmatprep.subr.mxu0 0.0
    %253 = vmatpush1.msra.mxu0 %v118
    %254 = vmatprep.subr.mxu0 0.0
    %255 = vmatpush2.msra.mxu0 0.0
    %256 = vmatprep.subr.mxu0 0.0
    %257 = vmatpush2.msra.mxu0 0.0
    %258 = vmatprep.subr.mxu0 0.0
    %259 = vmatpush2.msra.mxu0 0.0
    %260 = vmatprep.subr.mxu0 0.0
    %261 = vmatpush2.msra.mxu0 0.0
    %262 = vmatprep.subr.mxu0 0.0
    %263 = vmatpush2.msra.mxu0 0.0
    %264 = vmatprep.subr.mxu0 0.0
    %265 = vmatpush2.msra.mxu0 0.0
    %266 = vmatprep.subr.mxu0 0.0
    %267 = vmatpush2.msra.mxu0 0.0
    %268 = vmatprep.subr.mxu0 0.0
    %269 = vmatpush2.msra.mxu0 0.0
    %270 = vmatprep.subr.mxu0 0.0
    %271 = vmatpush2.msra.mxu0 0.0
    %272 = vmatprep.subr.mxu0 0.0
    %273 = vmatpush2.msra.mxu0 0.0
    %274 = vmatprep.subr.mxu0 0.0
    %275 = vmatpush2.msra.mxu0 0.0
    %276 = vmatprep.subr.mxu0 0.0
    %277 = vmatpush2.msra.mxu0 0.0
    %278 = vmatprep.subr.mxu0 0.0
    %279 = vmatpush2.msra.mxu0 0.0
    %280 = vmatprep.subr.mxu0 0.0
    %281 = vmatpush2.msra.mxu0 0.0
    %282 = vmatprep.subr.mxu0 0.0
    %283 = vmatpush2.msra.mxu0 0.0
    %284 = vmatprep.subr.mxu0 0.0
    %285 = vmatpush2.msra.mxu0 0.0
    %286 = vmatprep.mubr.f32.mxu0 0.0
    %287 = vmatmul.mubr.f32.gmra.mxu0 %v217
    %v288 = vpop.f32.mrf.mxu0
    %v289 = vadd.f32 0.0, %v288
    %v290 = vpop.f32.mrf.mxu0
    %291 = vmatprep.mubr.f32.mxu0 0.0
    %292 = vmatmul.mubr.f32.gmra.mxu0 %v220
    %v293 = vpop.f32.mrf.mxu0
    %v294 = vadd.f32 0.0, %v293
    %v295 = vpop.f32.mrf.mxu0
    %296 = vdwg.mxu0
    %vm297 = vcmp.ge.s32.totalorder %v121, 8
    %vm298 = vcmp.lt.s32.totalorder %v121, 20
    %vm299 = vmand %vm297, %vm298
    %v300 = vsel %vm299, 1, 0
    %vm301 = vcmp.eq.s32.totalorder %v300, 1
    %v302 = vsel %vm301, %v289, %v211
    %v303 = vsel %vm301, %v294, %v212
    %v304 = vlaneseq
    %v305 = vshrl.u32 %v304, 7
    %v306 = vsub.s32 0, %v305
    %v307 = vrot.slane %v111, %v306
    %vm308 = vcmask 195584
    %v310 = vsel %vm308, %v302, 0
    %v313 = vsel %vm308, %v303, 0
    %315 = vmatprep.subr.mxu0 0.0
    %316 = vmatpush1.msra.mxu0 0.0
    %317 = vmatprep.subr.mxu0 0.0
    %318 = vmatpush1.msra.mxu0 0.0
    %319 = vmatprep.subr.mxu0 0.0
    %320 = vmatpush1.msra.mxu0 0.0
    %321 = vmatprep.subr.mxu0 0.0
    %322 = vmatpush1.msra.mxu0 0.0
    %323 = vmatprep.subr.mxu0 0.0
    %324 = vmatpush1.msra.mxu0 0.0
    %325 = vmatprep.subr.mxu0 0.0
    %326 = vmatpush1.msra.mxu0 0.0
    %327 = vmatprep.subr.mxu0 0.0
    %328 = vmatpush1.msra.mxu0 0.0
    %329 = vmatprep.subr.mxu0 0.0
    %330 = vmatpush1.msra.mxu0 0.0
    %331 = vmatprep.subr.mxu0 0.0
    %332 = vmatpush1.msra.mxu0 0.0
    %333 = vmatprep.subr.mxu0 0.0
    %334 = vmatpush1.msra.mxu0 0.0
    %335 = vmatprep.subr.mxu0 0.0
    %336 = vmatpush1.msra.mxu0 0.0
    %337 = vmatprep.subr.mxu0 0.0
    %338 = vmatpush1.msra.mxu0 0.0
    %339 = vmatprep.subr.mxu0 0.0
    %340 = vmatpush1.msra.mxu0 0.0
    %341 = vmatprep.subr.mxu0 0.0
    %342 = vmatpush1.msra.mxu0 %v94
    %343 = vmatprep.subr.mxu0 0.0
    %344 = vmatpush1.msra.mxu0 %v93
    %345 = vmatprep.subr.mxu0 0.0
    %346 = vmatpush1.msra.mxu0 %v92
    %347 = vmatprep.subr.mxu0 0.0
    %348 = vmatpush2.msra.mxu0 0.0
    %349 = vmatprep.subr.mxu0 0.0
    %350 = vmatpush2.msra.mxu0 0.0
    %351 = vmatprep.subr.mxu0 0.0
    %352 = vmatpush2.msra.mxu0 0.0
    %353 = vmatprep.subr.mxu0 0.0
    %354 = vmatpush2.msra.mxu0 0.0
    %355 = vmatprep.subr.mxu0 0.0
    %356 = vmatpush2.msra.mxu0 0.0
    %357 = vmatprep.subr.mxu0 0.0
    %358 = vmatpush2.msra.mxu0 0.0
    %359 = vmatprep.subr.mxu0 0.0
    %360 = vmatpush2.msra.mxu0 0.0
    %361 = vmatprep.subr.mxu0 0.0
    %362 = vmatpush2.msra.mxu0 0.0
    %363 = vmatprep.subr.mxu0 0.0
    %364 = vmatpush2.msra.mxu0 0.0
    %365 = vmatprep.subr.mxu0 0.0
    %366 = vmatpush2.msra.mxu0 0.0
    %367 = vmatprep.subr.mxu0 0.0
    %368 = vmatpush2.msra.mxu0 0.0
    %369 = vmatprep.subr.mxu0 0.0
    %370 = vmatpush2.msra.mxu0 0.0
    %371 = vmatprep.subr.mxu0 0.0
    %372 = vmatpush2.msra.mxu0 0.0
    %373 = vmatprep.subr.mxu0 0.0
    %374 = vmatpush2.msra.mxu0 0.0
    %375 = vmatprep.subr.mxu0 0.0
    %376 = vmatpush2.msra.mxu0 0.0
    %377 = vmatprep.subr.mxu0 0.0
    %378 = vmatpush2.msra.mxu0 0.0
    %379 = vmatprep.mubr.f32.mxu0 0.0
    %380 = vmatmul.mubr.f32.gmra.mxu0 %v310
    %v381 = vpop.f32.mrf.mxu0
    %v382 = vadd.f32 %v307, %v381
    %v383 = vpop.f32.mrf.mxu0
    %384 = vmatprep.mubr.f32.mxu0 0.0
    %385 = vmatmul.mubr.f32.gmra.mxu0 %v313
    %v386 = vpop.f32.mrf.mxu0
    %v387 = vadd.f32 %v307, %v386
    %v388 = vpop.f32.mrf.mxu0
    %389 = vdwg.mxu0
    %v390 = vtanh.pop %v382
    %v391 = vtanh.pop %v387
    %v392 = vlaneseq
    %v393 = vshrl.u32 %v392, 7
    %v394 = vsub.s32 0, %v393
    %v395 = vrot.slane %v112, %v394
    %vm396 = vcmask 523264
    %v398 = vsel %vm396, %v390, 0
    %v401 = vsel %vm396, %v391, 0
    %403 = vmatprep.subr.mxu0 0.0
    %404 = vmatpush1.msra.mxu0 0.0
    %405 = vmatprep.subr.mxu0 0.0
    %406 = vmatpush1.msra.mxu0 0.0
    %407 = vmatprep.subr.mxu0 0.0
    %408 = vmatpush1.msra.mxu0 0.0
    %409 = vmatprep.subr.mxu0 0.0
    %410 = vmatpush1.msra.mxu0 0.0
    %411 = vmatprep.subr.mxu0 0.0
    %412 = vmatpush1.msra.mxu0 0.0
    %413 = vmatprep.subr.mxu0 0.0
    %414 = vmatpush1.msra.mxu0 0.0
    %415 = vmatprep.subr.mxu0 0.0
    %416 = vmatpush1.msra.mxu0 0.0
    %417 = vmatprep.subr.mxu0 0.0
    %418 = vmatpush1.msra.mxu0 0.0
    %419 = vmatprep.subr.mxu0 0.0
    %420 = vmatpush1.msra.mxu0 %v102
    %421 = vmatprep.subr.mxu0 0.0
    %422 = vmatpush1.msra.mxu0 %v101
    %423 = vmatprep.subr.mxu0 0.0
    %424 = vmatpush1.msra.mxu0 %v100
    %425 = vmatprep.subr.mxu0 0.0
    %426 = vmatpush1.msra.mxu0 %v99
    %427 = vmatprep.subr.mxu0 0.0
    %428 = vmatpush1.msra.mxu0 %v98
    %429 = vmatprep.subr.mxu0 0.0
    %430 = vmatpush1.msra.mxu0 %v97
    %431 = vmatprep.subr.mxu0 0.0
    %432 = vmatpush1.msra.mxu0 %v96
    %433 = vmatprep.subr.mxu0 0.0
    %434 = vmatpush1.msra.mxu0 %v95
    %435 = vmatprep.subr.mxu0 0.0
    %436 = vmatpush2.msra.mxu0 0.0
    %437 = vmatprep.subr.mxu0 0.0
    %438 = vmatpush2.msra.mxu0 0.0
    %439 = vmatprep.subr.mxu0 0.0
    %440 = vmatpush2.msra.mxu0 0.0
    %441 = vmatprep.subr.mxu0 0.0
    %442 = vmatpush2.msra.mxu0 0.0
    %443 = vmatprep.subr.mxu0 0.0
    %444 = vmatpush2.msra.mxu0 0.0
    %445 = vmatprep.subr.mxu0 0.0
    %446 = vmatpush2.msra.mxu0 0.0
    %447 = vmatprep.subr.mxu0 0.0
    %448 = vmatpush2.msra.mxu0 0.0
    %449 = vmatprep.subr.mxu0 0.0
    %450 = vmatpush2.msra.mxu0 0.0
    %451 = vmatprep.subr.mxu0 0.0
    %452 = vmatpush2.msra.mxu0 0.0
    %453 = vmatprep.subr.mxu0 0.0
    %454 = vmatpush2.msra.mxu0 0.0
    %455 = vmatprep.subr.mxu0 0.0
    %456 = vmatpush2.msra.mxu0 0.0
    %457 = vmatprep.subr.mxu0 0.0
    %458 = vmatpush2.msra.mxu0 0.0
    %459 = vmatprep.subr.mxu0 0.0
    %460 = vmatpush2.msra.mxu0 0.0
    %461 = vmatprep.subr.mxu0 0.0
    %462 = vmatpush2.msra.mxu0 0.0
    %463 = vmatprep.subr.mxu0 0.0
    %464 = vmatpush2.msra.mxu0 0.0
    %465 = vmatprep.subr.mxu0 0.0
    %466 = vmatpush2.msra.mxu0 0.0
    %467 = vmatprep.mubr.f32.mxu0 0.0
    %468 = vmatmul.mubr.f32.gmra.mxu0 %v398
    %v469 = vpop.f32.mrf.mxu0
    %v470 = vadd.f32 %v395, %v469
    %v471 = vpop.f32.mrf.mxu0
    %472 = vmatprep.mubr.f32.mxu0 0.0
    %473 = vmatmul.mubr.f32.gmra.mxu0 %v401
    %v474 = vpop.f32.mrf.mxu0
    %v475 = vadd.f32 %v395, %v474
    %v476 = vpop.f32.mrf.mxu0
    %477 = vdwg.mxu0
    %v478 = vtanh.pop %v470
    %v479 = vtanh.pop %v475
    %v480 = vld [vmem:[#allocation3] sm:$0xff]
    %v481 = vld [vmem:[#allocation3 + $0x8] sm:$0xff]
    %vm482 = vcmask 261120
    %v484 = vsel %vm482, %v480, 0
    %v487 = vsel %vm482, %v481, 0
    %489 = vmatprep.subr.mxu0 0.0
    %490 = vmatpush1.msra.mxu0 0.0
    %491 = vmatprep.subr.mxu0 0.0
    %492 = vmatpush1.msra.mxu0 0.0
    %493 = vmatprep.subr.mxu0 0.0
    %494 = vmatpush1.msra.mxu0 0.0
    %495 = vmatprep.subr.mxu0 0.0
    %496 = vmatpush1.msra.mxu0 0.0
    %497 = vmatprep.subr.mxu0 0.0
    %498 = vmatpush1.msra.mxu0 0.0
    %499 = vmatprep.subr.mxu0 0.0
    %500 = vmatpush1.msra.mxu0 0.0
    %501 = vmatprep.subr.mxu0 0.0
    %502 = vmatpush1.msra.mxu0 0.0
    %503 = vmatprep.subr.mxu0 0.0
    %504 = vmatpush1.msra.mxu0 0.0
    %505 = vmatprep.subr.mxu0 0.0
    %506 = vmatpush1.msra.mxu0 0.0
    %507 = vmatprep.subr.mxu0 0.0
    %508 = vmatpush1.msra.mxu0 0.0
    %509 = vmatprep.subr.mxu0 0.0
    %510 = vmatpush1.msra.mxu0 0.0
    %511 = vmatprep.subr.mxu0 0.0
    %512 = vmatpush1.msra.mxu0 0.0
    %513 = vmatprep.subr.mxu0 0.0
    %514 = vmatpush1.msra.mxu0 %v106
    %515 = vmatprep.subr.mxu0 0.0
    %516 = vmatpush1.msra.mxu0 %v105
    %517 = vmatprep.subr.mxu0 0.0
    %518 = vmatpush1.msra.mxu0 %v104
    %519 = vmatprep.subr.mxu0 0.0
    %520 = vmatpush1.msra.mxu0 %v103
    %521 = vmatprep.subr.mxu0 0.0
    %522 = vmatpush2.msra.mxu0 0.0
    %523 = vmatprep.subr.mxu0 0.0
    %524 = vmatpush2.msra.mxu0 0.0
    %525 = vmatprep.subr.mxu0 0.0
    %526 = vmatpush2.msra.mxu0 0.0
    %527 = vmatprep.subr.mxu0 0.0
    %528 = vmatpush2.msra.mxu0 0.0
    %529 = vmatprep.subr.mxu0 0.0
    %530 = vmatpush2.msra.mxu0 0.0
    %531 = vmatprep.subr.mxu0 0.0
    %532 = vmatpush2.msra.mxu0 0.0
    %533 = vmatprep.subr.mxu0 0.0
    %534 = vmatpush2.msra.mxu0 0.0
    %535 = vmatprep.subr.mxu0 0.0
    %536 = vmatpush2.msra.mxu0 0.0
    %537 = vmatprep.subr.mxu0 0.0
    %538 = vmatpush2.msra.mxu0 0.0
    %539 = vmatprep.subr.mxu0 0.0
    %540 = vmatpush2.msra.mxu0 0.0
    %541 = vmatprep.subr.mxu0 0.0
    %542 = vmatpush2.msra.mxu0 0.0
    %543 = vmatprep.subr.mxu0 0.0
    %544 = vmatpush2.msra.mxu0 0.0
    %545 = vmatprep.subr.mxu0 0.0
    %546 = vmatpush2.msra.mxu0 0.0
    %547 = vmatprep.subr.mxu0 0.0
    %548 = vmatpush2.msra.mxu0 0.0
    %549 = vmatprep.subr.mxu0 0.0
    %550 = vmatpush2.msra.mxu0 0.0
    %551 = vmatprep.subr.mxu0 0.0
    %552 = vmatpush2.msra.mxu0 0.0
    %553 = vmatprep.mubr.f32.mxu0 0.0
    %554 = vmatmul.mubr.f32.gmra.mxu0 %v484
    %v555 = vpop.f32.mrf.mxu0
    %v556 = vadd.f32 0.0, %v555
    %v557 = vpop.f32.mrf.mxu0
    %558 = vmatprep.mubr.f32.mxu0 0.0
    %559 = vmatmul.mubr.f32.gmra.mxu0 %v487
    %v560 = vpop.f32.mrf.mxu0
    %v561 = vadd.f32 0.0, %v560
    %v562 = vpop.f32.mrf.mxu0
    %563 = vdwg.mxu0
    %v564 = vlaneseq
    %v565 = vshrl.u32 %v564, 7
    %v566 = vsub.s32 0, %v565
    %v567 = vrot.slane %v114, %v566
    %v568 = vmul.f32 %v556, %v567
    %v569 = vmul.f32 %v561, %v567
    %v570 = vsel %vm482, %v568, 0.0
    %571 = vadd.xlane.f32.xlu0 %v570
    %v572 = vpop.xlane.xlu0 %571
    %v573 = vsel %vm482, %v569, 0.0
    %574 = vadd.xlane.f32.xlu0 %v573
    %v575 = vpop.xlane.xlu0 %574
    %v577 = vsel %vm482, %v113, 0
    %v580 = vsel %vm482, %v556, 0
    %v583 = vsel %vm482, %v561, 0
    %585 = vmatprep.subr.mxu0 0.0
    %586 = vmatpush1.xpose.msra.mxu0 0.0
    %587 = vmatprep.subr.mxu0 0.0
    %588 = vmatpush1.xpose.msra.mxu0 0.0
    %589 = vmatprep.subr.mxu0 0.0
    %590 = vmatpush1.xpose.msra.mxu0 0.0
    %591 = vmatprep.subr.mxu0 0.0
    %592 = vmatpush1.xpose.msra.mxu0 0.0
    %593 = vmatprep.subr.mxu0 0.0
    %594 = vmatpush1.xpose.msra.mxu0 0.0
    %595 = vmatprep.subr.mxu0 0.0
    %596 = vmatpush1.xpose.msra.mxu0 0.0
    %597 = vmatprep.subr.mxu0 0.0
    %598 = vmatpush1.xpose.msra.mxu0 0.0
    %599 = vmatprep.subr.mxu0 0.0
    %600 = vmatpush1.xpose.msra.mxu0 0.0
    %601 = vmatprep.subr.mxu0 0.0
    %602 = vmatpush1.xpose.msra.mxu0 0.0
    %603 = vmatprep.subr.mxu0 0.0
    %604 = vmatpush1.xpose.msra.mxu0 0.0
    %605 = vmatprep.subr.mxu0 0.0
    %606 = vmatpush1.xpose.msra.mxu0 0.0
    %607 = vmatprep.subr.mxu0 0.0
    %608 = vmatpush1.xpose.msra.mxu0 0.0
    %609 = vmatprep.subr.mxu0 0.0
    %610 = vmatpush1.xpose.msra.mxu0 0.0
    %611 = vmatprep.subr.mxu0 0.0
    %612 = vmatpush1.xpose.msra.mxu0 0.0
    %613 = vmatprep.subr.mxu0 0.0
    %614 = vmatpush1.xpose.msra.mxu0 %v583
    %615 = vmatprep.subr.mxu0 0.0
    %616 = vmatpush1.xpose.msra.mxu0 %v580
    %617 = vmatprep.subr.mxu0 0.0
    %618 = vmatpush2.xpose.msra.mxu0 0.0
    %619 = vmatprep.subr.mxu0 0.0
    %620 = vmatpush2.xpose.msra.mxu0 0.0
    %621 = vmatprep.subr.mxu0 0.0
    %622 = vmatpush2.xpose.msra.mxu0 0.0
    %623 = vmatprep.subr.mxu0 0.0
    %624 = vmatpush2.xpose.msra.mxu0 0.0
    %625 = vmatprep.subr.mxu0 0.0
    %626 = vmatpush2.xpose.msra.mxu0 0.0
    %627 = vmatprep.subr.mxu0 0.0
    %628 = vmatpush2.xpose.msra.mxu0 0.0
    %629 = vmatprep.subr.mxu0 0.0
    %630 = vmatpush2.xpose.msra.mxu0 0.0
    %631 = vmatprep.subr.mxu0 0.0
    %632 = vmatpush2.xpose.msra.mxu0 0.0
    %633 = vmatprep.subr.mxu0 0.0
    %634 = vmatpush2.xpose.msra.mxu0 0.0
    %635 = vmatprep.subr.mxu0 0.0
    %636 = vmatpush2.xpose.msra.mxu0 0.0
    %637 = vmatprep.subr.mxu0 0.0
    %638 = vmatpush2.xpose.msra.mxu0 0.0
    %639 = vmatprep.subr.mxu0 0.0
    %640 = vmatpush2.xpose.msra.mxu0 0.0
    %641 = vmatprep.subr.mxu0 0.0
    %642 = vmatpush2.xpose.msra.mxu0 0.0
    %643 = vmatprep.subr.mxu0 0.0
    %644 = vmatpush2.xpose.msra.mxu0 0.0
    %645 = vmatprep.subr.mxu0 0.0
    %646 = vmatpush2.xpose.msra.mxu0 0.0
    %647 = vmatprep.subr.mxu0 0.0
    %648 = vmatpush2.xpose.msra.mxu0 0.0
    %649 = vmatprep.mubr.f32.mxu0 0.0
    %650 = vmatmul.mubr.f32.gmra.mxu0 %v577
    %v651 = vpop.f32.mrf.mxu0
    %v652 = vadd.f32 0.0, %v651
    %v653 = vpop.f32.mrf.mxu0
    %654 = vdwg.mxu0
    %v655 = vlaneseq
    %v656 = vshrl.u32 %v655, 7
    %v657 = vsub.s32 0, %v656
    %v658 = vrot.slane %v652, %v657
    %v659 = vadd.f32 %v572, %v658
    %v660 = vadd.f32 %v575, %v658
    %vm661 = vcmp.gt.f32.partialorder %v659, 0.0
    %vm662 = vcmp.gt.f32.partialorder %v660, 0.0
    %v663 = vmul.f32 %v659, 0.2
    %v664 = vmul.f32 %v660, 0.2
    %v665 = vsel %vm661, %v659, %v663
    %v666 = vsel %vm662, %v660, %v664
    %v667 = vld [vmem:[#allocation6] sm:$0xff]
    %v668 = vld [vmem:[#allocation6 + $0x8] sm:$0xff]
    %vm669 = vcmp.gt.f32.partialorder %v667, 0.0
    %vm670 = vcmp.gt.f32.partialorder %v668, 0.0
    %v671 = vsel %vm669, %v665, -1e+09
    %v672 = vsel %vm670, %v666, -1e+09
    %v673 = vsel %vm124, %v671, -inf
    %674 = vmax.xlane.f32.xlu0 %v673
    %v675 = vpop.xlane.xlu0 %674
    %v676 = vsel %vm124, %v672, -inf
    %677 = vmax.xlane.f32.xlu0 %v676
    %v678 = vpop.xlane.xlu0 %677
    %v679 = vsub.f32 %v671, %v675
    %v680 = vsub.f32 %v672, %v678
    %v681 = vmul.f32 %v679, 1.442695
    %v682 = vpow.pop %v681
    %v683 = vmul.f32 %v680, 1.442695
    %v684 = vpow.pop %v683
    %v685 = vsel %vm124, %v682, 0.0
    %686 = vadd.xlane.f32.xlu0 %v685
    %v687 = vpop.xlane.xlu0 %686
    %v688 = vsel %vm124, %v684, 0.0
    %689 = vadd.xlane.f32.xlu0 %v688
    %v690 = vpop.xlane.xlu0 %689
    %v691 = vrcp.pop %v687
    %v692 = vrcp.pop %v690
    %v693 = vmul.f32 %v682, %v691
    %v694 = vmul.f32 %v684, %v692
    %v695 = vlaneseq
    %v696 = vshrl.u32 %v695, 7
    %v697 = vsub.s32 0, %v696
    %v698 = vrot.slane %v115, %v697
    %v700 = vsel %vm124, %v693, 0
    %v703 = vsel %vm124, %v694, 0
    %705 = vmatprep.subr.mxu0 0.0
    %706 = vmatpush1.msra.mxu0 0.0
    %707 = vmatprep.subr.mxu0 0.0
    %708 = vmatpush1.msra.mxu0 0.0
    %709 = vmatprep.subr.mxu0 0.0
    %710 = vmatpush1.msra.mxu0 0.0
    %711 = vmatprep.subr.mxu0 0.0
    %712 = vmatpush1.msra.mxu0 0.0
    %713 = vmatprep.subr.mxu0 0.0
    %714 = vmatpush1.msra.mxu0 0.0
    %715 = vmatprep.subr.mxu0 0.0
    %716 = vmatpush1.msra.mxu0 0.0
    %717 = vmatprep.subr.mxu0 0.0
    %718 = vmatpush1.msra.mxu0 0.0
    %719 = vmatprep.subr.mxu0 0.0
    %720 = vmatpush1.msra.mxu0 0.0
    %721 = vmatprep.subr.mxu0 0.0
    %722 = vmatpush1.msra.mxu0 0.0
    %723 = vmatprep.subr.mxu0 0.0
    %724 = vmatpush1.msra.mxu0 0.0
    %725 = vmatprep.subr.mxu0 0.0
    %726 = vmatpush1.msra.mxu0 0.0
    %727 = vmatprep.subr.mxu0 0.0
    %728 = vmatpush1.msra.mxu0 0.0
    %729 = vmatprep.subr.mxu0 0.0
    %730 = vmatpush1.msra.mxu0 0.0
    %731 = vmatprep.subr.mxu0 0.0
    %732 = vmatpush1.msra.mxu0 0.0
    %733 = vmatprep.subr.mxu0 0.0
    %734 = vmatpush1.msra.mxu0 %v561
    %735 = vmatprep.subr.mxu0 0.0
    %736 = vmatpush1.msra.mxu0 %v556
    %737 = vmatprep.subr.mxu0 0.0
    %738 = vmatpush2.msra.mxu0 0.0
    %739 = vmatprep.subr.mxu0 0.0
    %740 = vmatpush2.msra.mxu0 0.0
    %741 = vmatprep.subr.mxu0 0.0
    %742 = vmatpush2.msra.mxu0 0.0
    %743 = vmatprep.subr.mxu0 0.0
    %744 = vmatpush2.msra.mxu0 0.0
    %745 = vmatprep.subr.mxu0 0.0
    %746 = vmatpush2.msra.mxu0 0.0
    %747 = vmatprep.subr.mxu0 0.0
    %748 = vmatpush2.msra.mxu0 0.0
    %749 = vmatprep.subr.mxu0 0.0
    %750 = vmatpush2.msra.mxu0 0.0
    %751 = vmatprep.subr.mxu0 0.0
    %752 = vmatpush2.msra.mxu0 0.0
    %753 = vmatprep.subr.mxu0 0.0
    %754 = vmatpush2.msra.mxu0 0.0
    %755 = vmatprep.subr.mxu0 0.0
    %756 = vmatpush2.msra.mxu0 0.0
    %757 = vmatprep.subr.mxu0 0.0
    %758 = vmatpush2.msra.mxu0 0.0
    %759 = vmatprep.subr.mxu0 0.0
    %760 = vmatpush2.msra.mxu0 0.0
    %761 = vmatprep.subr.mxu0 0.0
    %762 = vmatpush2.msra.mxu0 0.0
    %763 = vmatprep.subr.mxu0 0.0
    %764 = vmatpush2.msra.mxu0 0.0
    %765 = vmatprep.subr.mxu0 0.0
    %766 = vmatpush2.msra.mxu0 0.0
    %767 = vmatprep.subr.mxu0 0.0
    %768 = vmatpush2.msra.mxu0 0.0
    %769 = vmatprep.mubr.f32.mxu0 0.0
    %770 = vmatmul.mubr.f32.gmra.mxu0 %v700
    %v771 = vpop.f32.mrf.mxu0
    %v772 = vadd.f32 %v698, %v771
    %v773 = vpop.f32.mrf.mxu0
    %774 = vmatprep.mubr.f32.mxu0 0.0
    %775 = vmatmul.mubr.f32.gmra.mxu0 %v703
    %v776 = vpop.f32.mrf.mxu0
    %v777 = vadd.f32 %v698, %v776
    %v778 = vpop.f32.mrf.mxu0
    %779 = vdwg.mxu0
    %v780 = vtanh.pop %v772
    %v781 = vtanh.pop %v777
    %782 = vst.msk [vmem:[#allocation2] sm:$0xff] %vm482, %v478
    %783 = vst.msk [vmem:[#allocation2 + $0x8] sm:$0xff] %vm482, %v479
    %784 = vst.msk [vmem:[#allocation2 + $0x10] sm:$0xff] %vm482, %v780
    %785 = vst.msk [vmem:[#allocation2 + $0x18] sm:$0xff] %vm482, %v781
    %v786 = vld [vmem:[#allocation2] sm:$0xff]
    %v787 = vld [vmem:[#allocation2 + $0x8] sm:$0xff]
    %v788 = vld [vmem:[#allocation2 + $0x10] sm:$0xff]
    %v789 = vld [vmem:[#allocation2 + $0x18] sm:$0xff]
    %v790 = vlaneseq
    %v791 = vshrl.u32 %v790, 7
    %v792 = vsub.s32 0, %v791
    %v793 = vrot.slane %v116, %v792
    %v795 = vsel %vm482, %v786, 0
    %v798 = vsel %vm482, %v787, 0
    %v801 = vsel %vm482, %v788, 0
    %v804 = vsel %vm482, %v789, 0
    %806 = vmatprep.subr.mxu0 0.0
    %807 = vmatpush1.msra.mxu0 0.0
    %808 = vmatprep.subr.mxu0 0.0
    %809 = vmatpush1.msra.mxu0 0.0
    %810 = vmatprep.subr.mxu0 0.0
    %811 = vmatpush1.msra.mxu0 0.0
    %812 = vmatprep.subr.mxu0 0.0
    %813 = vmatpush1.msra.mxu0 0.0
    %814 = vmatprep.subr.mxu0 0.0
    %815 = vmatpush1.msra.mxu0 0.0
    %816 = vmatprep.subr.mxu0 0.0
    %817 = vmatpush1.msra.mxu0 0.0
    %818 = vmatprep.subr.mxu0 0.0
    %819 = vmatpush1.msra.mxu0 0.0
    %820 = vmatprep.subr.mxu0 0.0
    %821 = vmatpush1.msra.mxu0 0.0
    %822 = vmatprep.subr.mxu0 0.0
    %823 = vmatpush1.msra.mxu0 0.0
    %824 = vmatprep.subr.mxu0 0.0
    %825 = vmatpush1.msra.mxu0 0.0
    %826 = vmatprep.subr.mxu0 0.0
    %827 = vmatpush1.msra.mxu0 0.0
    %828 = vmatprep.subr.mxu0 0.0
    %829 = vmatpush1.msra.mxu0 0.0
    %830 = vmatprep.subr.mxu0 0.0
    %831 = vmatpush1.msra.mxu0 %v110
    %832 = vmatprep.subr.mxu0 0.0
    %833 = vmatpush1.msra.mxu0 %v109
    %834 = vmatprep.subr.mxu0 0.0
    %835 = vmatpush1.msra.mxu0 %v108
    %836 = vmatprep.subr.mxu0 0.0
    %837 = vmatpush1.msra.mxu0 %v107
    %838 = vmatprep.subr.mxu0 0.0
    %839 = vmatpush2.msra.mxu0 0.0
    %840 = vmatprep.subr.mxu0 0.0
    %841 = vmatpush2.msra.mxu0 0.0
    %842 = vmatprep.subr.mxu0 0.0
    %843 = vmatpush2.msra.mxu0 0.0
    %844 = vmatprep.subr.mxu0 0.0
    %845 = vmatpush2.msra.mxu0 0.0
    %846 = vmatprep.subr.mxu0 0.0
    %847 = vmatpush2.msra.mxu0 0.0
    %848 = vmatprep.subr.mxu0 0.0
    %849 = vmatpush2.msra.mxu0 0.0
    %850 = vmatprep.subr.mxu0 0.0
    %851 = vmatpush2.msra.mxu0 0.0
    %852 = vmatprep.subr.mxu0 0.0
    %853 = vmatpush2.msra.mxu0 0.0
    %854 = vmatprep.subr.mxu0 0.0
    %855 = vmatpush2.msra.mxu0 0.0
    %856 = vmatprep.subr.mxu0 0.0
    %857 = vmatpush2.msra.mxu0 0.0
    %858 = vmatprep.subr.mxu0 0.0
    %859 = vmatpush2.msra.mxu0 0.0
    %860 = vmatprep.subr.mxu0 0.0
    %861 = vmatpush2.msra.mxu0 0.0
    %862 = vmatprep.subr.mxu0 0.0
    %863 = vmatpush2.msra.mxu0 0.0
    %864 = vmatprep.subr.mxu0 0.0
    %865 = vmatpush2.msra.mxu0 0.0
    %866 = vmatprep.subr.mxu0 0.0
    %867 = vmatpush2.msra.mxu0 0.0
    %868 = vmatprep.subr.mxu0 0.0
    %869 = vmatpush2.msra.mxu0 0.0
    %870 = vmatprep.mubr.f32.mxu0 0.0
    %871 = vmatmul.mubr.f32.gmra.mxu0 %v795
    %v872 = vpop.f32.mrf.mxu0
    %v873 = vadd.f32 %v793, %v872
    %v874 = vpop.f32.mrf.mxu0
    %875 = vmatprep.mubr.f32.mxu0 0.0
    %876 = vmatmul.mubr.f32.gmra.mxu0 %v798
    %v877 = vpop.f32.mrf.mxu0
    %v878 = vadd.f32 %v793, %v877
    %v879 = vpop.f32.mrf.mxu0
    %880 = vmatprep.mubr.f32.mxu0 0.0
    %881 = vmatmul.mubr.f32.gmra.mxu0 %v801
    %v882 = vpop.f32.mrf.mxu0
    %v883 = vadd.f32 %v793, %v882
    %v884 = vpop.f32.mrf.mxu0
    %885 = vmatprep.mubr.f32.mxu0 0.0
    %886 = vmatmul.mubr.f32.gmra.mxu0 %v804
    %v887 = vpop.f32.mrf.mxu0
    %v888 = vadd.f32 %v793, %v887
    %v889 = vpop.f32.mrf.mxu0
    %890 = vdwg.mxu0
    %v891 = vtanh.pop %v873
    %v892 = vtanh.pop %v878
    %v893 = vtanh.pop %v883
    %v894 = vtanh.pop %v888
    %v895 = vlaneseq
    %v896 = vshrl.u32 %v895, 7
    %v897 = vsub.s32 0, %v896
    %v898 = vrot.slane %v117, %v897
    %v899 = vmul.f32 %v891, %v898
    %v900 = vmul.f32 %v892, %v898
    %v901 = vmul.f32 %v893, %v898
    %v902 = vmul.f32 %v894, %v898
    %903 = vadd.xlane.f32.xlu0 %v899
    %v904 = vpop.xlane.xlu0 %903
    %905 = vadd.xlane.f32.xlu0 %v900
    %v906 = vpop.xlane.xlu0 %905
    %907 = vadd.xlane.f32.xlu0 %v901
    %v908 = vpop.xlane.xlu0 %907
    %909 = vadd.xlane.f32.xlu0 %v902
    %v910 = vpop.xlane.xlu0 %909
    %v911 = vadd.f32 %v904, %v906
    %v912 = vrot.slane %v911, 4
    %v913 = vadd.f32 %v911, %v912
    %v914 = vrot.slane %v913, 2
    %v915 = vadd.f32 %v913, %v914
    %v916 = vrot.slane %v915, 1
    %v917 = vadd.f32 %v915, %v916
    %v918 = vmul.f32 %v917, 0.0625
    %v919 = vadd.f32 %v908, %v910
    %v920 = vrot.slane %v919, 4
    %v921 = vadd.f32 %v919, %v920
    %v922 = vrot.slane %v921, 2
    %v923 = vadd.f32 %v921, %v922
    %v924 = vrot.slane %v923, 1
    %v925 = vadd.f32 %v923, %v924
    %v926 = vmul.f32 %v925, 0.0625
    %v927 = vmax.f32 %v918, %v926
    %v928 = vsub.f32 %v918, %v927
    %v929 = vmul.f32 %v928, 1.442695
    %v930 = vpow.pop %v929
    %v931 = vsub.f32 %v926, %v927
    %v932 = vmul.f32 %v931, 1.442695
    %v933 = vpow.pop %v932
    %v934 = vadd.f32 %v930, %v933
    %v935 = vrcp.pop %v934
    %v936 = vmul.f32 1.0, %v935
    %v937 = vmul.f32 %v930, %v936
    %v938 = vmul.f32 %v937, %v478
    %v939 = vmul.f32 %v937, %v479
    %v940 = vmul.f32 %v933, %v936
    %v941 = vmul.f32 %v940, %v780
    %v942 = vmul.f32 %v940, %v781
    %v943 = vadd.f32 %v938, %v941
    %v944 = vadd.f32 %v939, %v942
    %945 = vst.msk [vmem:[#allocation12] sm:$0xff] %vm482, %v943
    %946 = vst.msk [vmem:[#allocation12 + $0x8] sm:$0xff] %vm482, %v944
    // Predicated region
    $region46: #{tpu_custom_call.1} parent=1 // pred_check
      _
    $region47: #{tpu_custom_call.1} parent=1 // pred_check_branch
      %948 = sbr.rel (0) target = $region49
    $region48: #{tpu_custom_call.1} parent=1 // pred_region
      %s950 = ssub.s32 256, 256
      %951 = vsyncadd [#allocation5], %s950
      %s952 = sshll.u32 [#allocation12], 4
      %s953 = int_to_ptr.vmem [resolvable:$true] %s952
      %958 = dma.vmem_to_hbm [thread:$0]  %s953, 256, %s6, [#allocation5], 128, 128, 8
    $region49: #{tpu_custom_call.1} parent=1 // pred_fallthru
      _
    // Predicated region
    $region50: #{tpu_custom_call.1} parent=1 // pred_check
      _
    $region51: #{tpu_custom_call.1} parent=1 // pred_check_branch
      %960 = sbr.rel (0) target = $region53
    $region52: #{tpu_custom_call.1} parent=1 // pred_region
      %961 = dma.done [#allocation5], 256
    $region53: #{tpu_custom_call.1} parent=1 // pred_fallthru
      _
    %962 = vsyncpa [#allocation4], 1
    %963 = vsyncpa [#allocation7], 1
    %964 = vsyncpa [#allocation10], 1
    %965 = vsyncpa [#allocation5], 1

</llo_original>
